<compile_context>
chip_gen: v5e
topology: v5e:2x2
jax: 0.10.0
libtpu: 0.0.40
codegen_flags: <defaults>
</compile_context>

<pallas_src>
import functools

import jax
import jax.numpy as jnp
from jax.experimental import pallas as pl
from jax.experimental.pallas import tpu as pltpu


_NEG_LARGE = -1e30  # sigmoid(_NEG_LARGE) == 0 -> padded latent columns are exactly 0


def _round_up(n, m):
    return ((n + m - 1) // m) * m


def _physical_vmem_bytes():
    """Per-core VMEM capacity; conservative 64 MiB (v7x) fallback if the query fails."""
    try:
        return int(pltpu.get_tpu_info().vmem_capacity_bytes)
    except Exception:
        return 64 << 20


def _autoencoder_kernel(x_ref, wt_ref, w_ref, be_ref, bd_ref, lat_ref, rec_ref):
    """One batch tile of the tied-weight autoencoder forward.

    x_ref  : (TB, F)       activations
    wt_ref : (F, Lp)       encode weight, pre-transposed + latent-padded (VMEM-resident)
    w_ref  : (Lp, Fp)      decode (tied) weight, zero-padded rows/cols (VMEM-resident)
    be_ref : (1, Lp)  f32  encode bias (_NEG_LARGE in padded entries)
    bd_ref : (1, Fp)  f32  decode bias (0 in padded entries)
    lat_ref: (TB, Lp)      latent output (lane-dense)
    rec_ref: (TB, Fp)      reconstruction output (lane-dense)
    """
    # encode: x @ W_enc^T as a native (M,K)x(K,N) MXU matmul, f32 accumulation.
    pre = jnp.dot(x_ref[...], wt_ref[...], preferred_element_type=jnp.float32)
    latent = jax.nn.sigmoid(pre + be_ref[...])         # f32 bias add + sigmoid (VPU/EUP)

    lat_lo = latent.astype(lat_ref.dtype)               # single cast, reused below
    lat_ref[...] = lat_lo

    # decode: Dropout (eval mode -> identity) + latent @ W_enc (tied weights).
    # Padded latent columns are 0 and padded weight rows/cols are 0 -> no perturbation.
    # TODO(synk): training-mode stochastic dropout not implemented (eval-mode identity only).
    lat_mx = lat_lo if lat_ref.dtype == w_ref.dtype else latent.astype(w_ref.dtype)
    rec = jnp.dot(lat_mx, w_ref[...], preferred_element_type=jnp.float32)
    rec_ref[...] = (rec + bd_ref[...]).astype(rec_ref.dtype)


def prepare_params(w_enc, b_enc, b_dec, *, weight_dtype=jnp.bfloat16):
    """One-time parameter prep (outside the hot path; folds to constants under jit).

    * Pads the latent dim to Lp and the decode output dim to Fp (multiples of 128) so
      both kernel outputs are lane-dense (unmasked vst).
    * Builds the pre-transposed encode weight so both matmuls are native (M,K)x(K,N).
    * bf16 weights by default (recommended: also feed bf16 activations); pass
      weight_dtype=jnp.float32 for strict f32 parity with PyTorch.
    """
    L, F = w_enc.shape
    Lp = _round_up(L, 128)
    Fp = _round_up(F, 128)
    w_enc = w_enc.astype(weight_dtype)

    # encode weight, transposed: (F, Lp); padded latent columns are zero.
    w_t = jnp.zeros((F, Lp), weight_dtype).at[:, :L].set(w_enc.T)
    # decode (tied) weight: (Lp, Fp); padded rows/cols are zero.
    w = jnp.zeros((Lp, Fp), weight_dtype).at[:L, :F].set(w_enc)
    # encode bias: padded entries -> _NEG_LARGE so sigmoid() of padded columns is 0.
    be = jnp.full((1, Lp), _NEG_LARGE, jnp.float32).at[0, :L].set(b_enc.astype(jnp.float32))
    # decode bias: padded entries -> 0.
    bd = jnp.zeros((1, Fp), jnp.float32).at[0, :F].set(b_dec.astype(jnp.float32))
    return w_t, w, be, bd


@functools.partial(jax.jit, static_argnames=("latent_size", "block_b"))
def autoencoder_forward(x, w_t, w, be, bd, *, latent_size, block_b=None):
    """x: (B, F). (w_t, w, be, bd) from prepare_params.

    Returns (latent (B, latent_size), reconstruction (B, F)).
    """
    B, F = x.shape
    Lp = w_t.shape[1]
    Fp = w.shape[1]
    assert w_t.shape[0] == F and w.shape[0] == Lp
    out_dtype = x.dtype

    in_bytes = x.dtype.itemsize
    w_bytes = w.dtype.itemsize
    out_bytes = jnp.dtype(out_dtype).itemsize

    phys_vmem = _physical_vmem_bytes()
    vmem_cap = int(phys_vmem * 0.82)            # ~52 MiB on v7x (64 MiB), ~105 MiB on v5e/v6e
    if block_b is None:
        block_b = 1024 if phys_vmem >= (96 << 20) else 512

    def vmem_budget(tb):
        # resident weights/biases (counted double-buffered, conservatively)
        resident = 2 * (F * Lp + Lp * Fp) * w_bytes + 2 * (Lp + Fp) * 4
        # double-buffered streamed input/output tiles
        streamed = 2 * tb * F * in_bytes + 2 * tb * (Lp + Fp) * out_bytes
        # Mosaic-internal f32 intermediates (pre / latent / rec) + low-precision casts
        scratch = tb * (2 * Lp + Fp) * 4 + tb * (2 * Lp + Fp) * out_bytes
        return int(1.25 * (resident + streamed + scratch)) + (4 << 20)

    # --- batch tiling (no host-side pad of x: a ragged last tile is masked by Pallas) ---
    if B <= 8:
        TB = B                                   # single full-batch block
    else:
        TB = max(8, min(block_b, (B // 8) * 8))  # sublane-aligned, never exceeds B
        # >= 2 batch tiles so ("parallel",) shards across both v7x TensorCores
        # (harmless single-TC loop on v5e/v6e; ~0.35 us per extra grid step).
        if pl.cdiv(B, TB) < 2:
            TB = max(8, _round_up(pl.cdiv(B, 2), 8))
        # shrink the tile if the VMEM budget would exceed the physical cap
        while TB > 8 and vmem_budget(TB) > vmem_cap:
            TB = max(8, ((TB // 2) // 8) * 8)

    grid = (pl.cdiv(B, TB),)
    vmem_limit = min(max(vmem_budget(TB), 32 << 20), vmem_cap)

    latent_p, recon_p = pl.pallas_call(
        _autoencoder_kernel,
        out_shape=(
            jax.ShapeDtypeStruct((B, Lp), out_dtype),
            jax.ShapeDtypeStruct((B, Fp), out_dtype),
        ),
        grid=grid,
        in_specs=[
            pl.BlockSpec((TB, F), lambda i: (i, 0)),    # x: streamed over batch
            pl.BlockSpec((F, Lp), lambda i: (0, 0)),    # encode weight^T: VMEM-resident
            pl.BlockSpec((Lp, Fp), lambda i: (0, 0)),   # decode (tied) weight: resident
            pl.BlockSpec((1, Lp), lambda i: (0, 0)),    # b_enc: resident
            pl.BlockSpec((1, Fp), lambda i: (0, 0)),    # b_dec: resident
        ],
        out_specs=(
            pl.BlockSpec((TB, Lp), lambda i: (i, 0)),   # latent (lane-dense, padded)
            pl.BlockSpec((TB, Fp), lambda i: (i, 0)),   # reconstruction (lane-dense)
        ),
        compiler_params=pltpu.CompilerParams(
            dimension_semantics=("parallel",),          # independent batch tiles -> megacore
            vmem_limit_bytes=vmem_limit,
        ),
    )(x, w_t, w, be, bd)

    # Slice off latent / feature padding (no-op copies when already 128-aligned).
    return latent_p[:, :latent_size], recon_p[:, :F]


def _reference(x, w_enc, b_enc, b_dec):
    latent = jax.nn.sigmoid(x @ w_enc.T + b_enc)
    recon = latent @ w_enc + b_dec                 # tied: decode.weight = encode.weight.T
    return latent, recon


if __name__ == "__main__":
    # Small shapes consistent with the module: in_features=128, latent_size=32, batch=8.
    B, F, L = 8, 128, 32
    key = jax.random.PRNGKey(0)
    kx, kw, kb1, kb2 = jax.random.split(key, 4)

    x = jax.random.normal(kx, (B, F), dtype=jnp.float32)
    w_enc = jax.random.normal(kw, (L, F), dtype=jnp.float32) * 0.1   # encode.weight
    b_enc = jax.random.normal(kb1, (L,), dtype=jnp.float32) * 0.1    # encode.bias
    b_dec = jax.random.normal(kb2, (F,), dtype=jnp.float32) * 0.1    # decode.bias

    ref_latent, ref_recon = _reference(x, w_enc, b_enc, b_dec)

    # f32 path (strict parity with the PyTorch-default-precision reference).
    params32 = prepare_params(w_enc, b_enc, b_dec, weight_dtype=jnp.float32)
    latent, recon = jax.block_until_ready(
        autoencoder_forward(x, *params32, latent_size=L))
    assert latent.shape == (B, L) and recon.shape == (B, F)
    assert jnp.allclose(latent, ref_latent, atol=1e-5, rtol=1e-5)
    assert jnp.allclose(recon, ref_recon, atol=1e-4, rtol=1e-4)

    # bf16 I/O path (the default / recommended path: halves HBM traffic, which is the
    # dominant cost since the kernel is bandwidth-bound on every TPU generation).
    params_bf16 = prepare_params(w_enc, b_enc, b_dec)            # bf16 weights by default
    lat16, rec16 = jax.block_until_ready(
        autoencoder_forward(x.astype(jnp.bfloat16), *params_bf16, latent_size=L))
    assert lat16.dtype == jnp.bfloat16 and rec16.dtype == jnp.bfloat16
    assert jnp.allclose(lat16.astype(jnp.float32), ref_latent, atol=3e-2, rtol=3e-2)
    assert jnp.allclose(rec16.astype(jnp.float32), ref_recon, atol=8e-2, rtol=8e-2)

    print("KERNEL_OK")
</pallas_src>

<mosaic_0001>
module attributes {stable_mosaic.version = 11 : i64} {
  func.func @_autoencoder_kernel(%arg0: i32, %arg1: memref<8x128xf32, #tpu.memory_space<vmem>>, %arg2: memref<128x128xf32, #tpu.memory_space<vmem>>, %arg3: memref<128x128xf32, #tpu.memory_space<vmem>>, %arg4: memref<1x128xf32, #tpu.memory_space<vmem>>, %arg5: memref<1x128xf32, #tpu.memory_space<vmem>>, %arg6: memref<8x128xf32, #tpu.memory_space<vmem>>, %arg7: memref<8x128xf32, #tpu.memory_space<vmem>>) attributes {dimension_semantics = [#tpu.dimension_semantics<parallel>], iteration_bounds = array<i64: 1>, scalar_prefetch = 0 : i64, scratch_operands = 0 : i64, tpu.core_type = #tpu.core_type<tc>, window_params = [{transform_indices = @transform_0, window_bounds = array<i64: 8, 128>}, {pipeline_mode = #tpu.pipeline_mode<synchronous>, transform_indices = @transform_1, window_bounds = array<i64: 128, 128>}, {pipeline_mode = #tpu.pipeline_mode<synchronous>, transform_indices = @transform_2, window_bounds = array<i64: 128, 128>}, {pipeline_mode = #tpu.pipeline_mode<synchronous>, transform_indices = @transform_3, window_bounds = array<i64: 1, 128>}, {pipeline_mode = #tpu.pipeline_mode<synchronous>, transform_indices = @transform_4, window_bounds = array<i64: 1, 128>}, {transform_indices = @transform_5, window_bounds = array<i64: 8, 128>}, {transform_indices = @transform_6, window_bounds = array<i64: 8, 128>}]} {
    %c0 = arith.constant 0 : index
    %c0_0 = arith.constant 0 : index
    %0 = vector.load %arg1[%c0, %c0_0] : memref<8x128xf32, #tpu.memory_space<vmem>>, vector<8x128xf32>
    %c0_1 = arith.constant 0 : index
    %c0_2 = arith.constant 0 : index
    %1 = vector.load %arg2[%c0_1, %c0_2] : memref<128x128xf32, #tpu.memory_space<vmem>>, vector<128x128xf32>
    %cst = arith.constant dense<0.000000e+00> : vector<8x128xf32>
    %2 = tpu.matmul %0, %1, %cst {dimension_numbers = #tpu.dot_dimension_numbers<[1], [0], [0], [1], [0, 0, 1, 1], [], []>} : vector<8x128xf32>, vector<128x128xf32>, vector<8x128xf32> -> vector<8x128xf32>
    %c0_3 = arith.constant 0 : index
    %c0_4 = arith.constant 0 : index
    %3 = vector.load %arg4[%c0_3, %c0_4] : memref<1x128xf32, #tpu.memory_space<vmem>>, vector<1x128xf32>
    %4 = vector.broadcast %3 : vector<1x128xf32> to vector<8x128xf32>
    %5 = arith.addf %2, %4 : vector<8x128xf32>
    %6 = arith.negf %5 : vector<8x128xf32>
    %7 = math.exp %6 : vector<8x128xf32>
    %cst_5 = arith.constant 1.000000e+00 : f32
    %8 = vector.broadcast %cst_5 : f32 to vector<8x128xf32>
    %9 = arith.addf %8, %7 : vector<8x128xf32>
    %10 = arith.divf %8, %9 : vector<8x128xf32>
    %c0_6 = arith.constant 0 : index
    %c0_7 = arith.constant 0 : index
    %11 = vector.load %arg6[%c0_6, %c0_7] : memref<8x128xf32, #tpu.memory_space<vmem>>, vector<8x128xf32>
    tpu.vector_store %arg6[%c0_6, %c0_7], %10 {strides = array<i32>} : memref<8x128xf32, #tpu.memory_space<vmem>>, vector<8x128xf32>,
    %c0_8 = arith.constant 0 : index
    %c0_9 = arith.constant 0 : index
    %12 = vector.load %arg3[%c0_8, %c0_9] : memref<128x128xf32, #tpu.memory_space<vmem>>, vector<128x128xf32>
    %cst_10 = arith.constant dense<0.000000e+00> : vector<8x128xf32>
    %13 = tpu.matmul %10, %12, %cst_10 {dimension_numbers = #tpu.dot_dimension_numbers<[1], [0], [0], [1], [0, 0, 1, 1], [], []>} : vector<8x128xf32>, vector<128x128xf32>, vector<8x128xf32> -> vector<8x128xf32>
    %c0_11 = arith.constant 0 : index
    %c0_12 = arith.constant 0 : index
    %14 = vector.load %arg5[%c0_11, %c0_12] : memref<1x128xf32, #tpu.memory_space<vmem>>, vector<1x128xf32>
    %15 = vector.broadcast %14 : vector<1x128xf32> to vector<8x128xf32>
    %16 = arith.addf %13, %15 : vector<8x128xf32>
    %c0_13 = arith.constant 0 : index
    %c0_14 = arith.constant 0 : index
    %17 = vector.load %arg7[%c0_13, %c0_14] : memref<8x128xf32, #tpu.memory_space<vmem>>, vector<8x128xf32>
    tpu.vector_store %arg7[%c0_13, %c0_14], %16 {strides = array<i32>} : memref<8x128xf32, #tpu.memory_space<vmem>>, vector<8x128xf32>,
    return
  }
  func.func @transform_0(%arg0: i32) -> (i32, i32) {
    %c0_i32 = arith.constant 0 : i32
    %c0_i32_0 = arith.constant 0 : i32
    return %arg0, %c0_i32 : i32, i32
  }
  func.func @transform_1(%arg0: i32) -> (i32, i32) {
    %c0_i32 = arith.constant 0 : i32
    %c0_i32_0 = arith.constant 0 : i32
    %c0_i32_1 = arith.constant 0 : i32
    return %c0_i32, %c0_i32_0 : i32, i32
  }
  func.func @transform_2(%arg0: i32) -> (i32, i32) {
    %c0_i32 = arith.constant 0 : i32
    %c0_i32_0 = arith.constant 0 : i32
    %c0_i32_1 = arith.constant 0 : i32
    return %c0_i32, %c0_i32_0 : i32, i32
  }
  func.func @transform_3(%arg0: i32) -> (i32, i32) {
    %c0_i32 = arith.constant 0 : i32
    %c0_i32_0 = arith.constant 0 : i32
    %c0_i32_1 = arith.constant 0 : i32
    return %c0_i32, %c0_i32_0 : i32, i32
  }
  func.func @transform_4(%arg0: i32) -> (i32, i32) {
    %c0_i32 = arith.constant 0 : i32
    %c0_i32_0 = arith.constant 0 : i32
    %c0_i32_1 = arith.constant 0 : i32
    return %c0_i32, %c0_i32_0 : i32, i32
  }
  func.func @transform_5(%arg0: i32) -> (i32, i32) {
    %c0_i32 = arith.constant 0 : i32
    %c0_i32_0 = arith.constant 0 : i32
    return %arg0, %c0_i32 : i32, i32
  }
  func.func @transform_6(%arg0: i32) -> (i32, i32) {
    %c0_i32 = arith.constant 0 : i32
    %c0_i32_0 = arith.constant 0 : i32
    return %arg0, %c0_i32 : i32, i32
  }
}

</mosaic_0001>

<llo_original>
// kernel: autoencoder_forward.1
$region0: #{autoencoder_forward.1}
  #allocation0 [shape = 'u32[]', space=smem, size = 0x4, offset = 0x4, fixed_abs, tag = 'smem constant byte address 0x4 - core index']
  #allocation1 [shape = 'u32[72,128]{1,0:T(1,128)}', space=vmem, size = 0x9000, scoped, tag = 'internal scratch']
  %s0 = inlined_call_operand.hbm [shape: f32[8,128], index: 0, kind: input, shape index: {}]
  %s1 = inlined_call_operand.hbm [shape: f32[128,128], index: 1, kind: input, shape index: {}]
  %s2 = inlined_call_operand.hbm [shape: f32[128,128], index: 2, kind: input, shape index: {}]
  %s3 = inlined_call_operand.vmem [shape: f32[1,128], index: 3, kind: input, shape index: {}]
  %s4 = inlined_call_operand.vmem [shape: f32[1,128], index: 4, kind: input, shape index: {}]
  %s5 = inlined_call_operand.hbm [shape: f32[8,128], index: 5, kind: output, shape index: {0}]
  %s6 = inlined_call_operand.hbm [shape: f32[8,128], index: 6, kind: output, shape index: {1}]
  %7 = xla_tuple %s5, %s6
  %s8 = sld [smem:[#allocation0]]
  $region50: #{autoencoder_forward.1} parent=0
    _
  %s10 = ssub.s32 1, %s8
  %s11 = scalar_select 0, %s10, %s8
  $region1: #{autoencoder_forward.1} parent=0
    #allocation2 [shape = 'u8[4096]{0}', space=vmem, size = 0x1000, scoped, tag = 'input window, operand 0, single buffered']
    #allocation3 [shape = 's32[1]{0}', space=sflag, size = 0x4, scoped, tag = 'scoped memory for autoencoder_forward.1']
    #allocation4 [shape = 's32[1]{0}', space=sflag, size = 0x4, scoped, tag = 'scoped memory for autoencoder_forward.1']
    #allocation5 [shape = 'u8[65536]{0}', space=vmem, size = 0x10000, scoped, tag = 'input window, operand 1, single buffered']
    #allocation6 [shape = 's32[1]{0}', space=sflag, size = 0x4, scoped, tag = 'scoped memory for autoencoder_forward.1']
    #allocation7 [shape = 'u8[65536]{0}', space=vmem, size = 0x10000, scoped, tag = 'input window, operand 2, single buffered']
    #allocation8 [shape = 'u8[4096]{0}', space=vmem, size = 0x1000, scoped, tag = 'output window, operand 0, single buffered']
    #allocation9 [shape = 'u8[4096]{0}', space=vmem, size = 0x1000, scoped, tag = 'output window, operand 1, single buffered']
    #allocation10 [shape = 's32[1]{0}', space=sflag, size = 0x4, scoped, tag = 'scoped memory for autoencoder_forward.1']
    %12 = vsyncpa [#allocation3], 0
    %13 = vsyncpa [#allocation6], 0
    %14 = vsyncpa [#allocation4], 0
    %15 = vsyncpa [#allocation10], 0
    // Predicated region
    $region2: #{autoencoder_forward.1} parent=1 // pred_check
      _
    $region3: #{autoencoder_forward.1} parent=1 // pred_check_branch
      %17 = sbr.rel (0) target = $region5
    $region4: #{autoencoder_forward.1} parent=1 // pred_region
      %19 = vsyncadd [#allocation3], 0
      %s21 = sshll.u32 %s0, 4
      %s22 = int_to_ptr.hbm [resolvable:$true] %s21
      %s23 = sshll.u32 [#allocation2], 4
      %s24 = int_to_ptr.vmem [resolvable:$true] %s23
      %26 = dma.hbm_to_vmem [thread:$0]  %s22, 128, %s24, [#allocation3]
    $region5: #{autoencoder_forward.1} parent=1 // pred_fallthru
      _
    // Predicated region
    $region6: #{autoencoder_forward.1} parent=1 // pred_check
      _
    $region7: #{autoencoder_forward.1} parent=1 // pred_check_branch
      %28 = sbr.rel (0) target = $region9
    $region8: #{autoencoder_forward.1} parent=1 // pred_region
      %30 = vsyncadd [#allocation6], 0
      %s31 = sshll.u32 %s1, 4
      %s32 = int_to_ptr.hbm [resolvable:$true] %s31
      %s33 = sshll.u32 [#allocation5], 4
      %s34 = int_to_ptr.vmem [resolvable:$true] %s33
      %39 = dma.hbm_to_vmem [thread:$0]  %s32, 2048, %s34, [#allocation6], 128, 128, 8
    $region9: #{autoencoder_forward.1} parent=1 // pred_fallthru
      _
    // Predicated region
    $region10: #{autoencoder_forward.1} parent=1 // pred_check
      _
    $region11: #{autoencoder_forward.1} parent=1 // pred_check_branch
      %41 = sbr.rel (0) target = $region13
    $region12: #{autoencoder_forward.1} parent=1 // pred_region
      %43 = vsyncadd [#allocation6], 0
      %s44 = sshll.u32 %s2, 4
      %s45 = int_to_ptr.hbm [resolvable:$true] %s44
      %s46 = sshll.u32 [#allocation7], 4
      %s47 = int_to_ptr.vmem [resolvable:$true] %s46
      %52 = dma.hbm_to_vmem [thread:$0]  %s45, 2048, %s47, [#allocation6], 128, 128, 8
    $region13: #{autoencoder_forward.1} parent=1 // pred_fallthru
      _
    // Predicated region
    $region14: #{autoencoder_forward.1} parent=1 // pred_check
      _
    $region15: #{autoencoder_forward.1} parent=1 // pred_check_branch
      %54 = sbr.rel (0) target = $region17
    $region16: #{autoencoder_forward.1} parent=1 // pred_region
      _
    $region17: #{autoencoder_forward.1} parent=1 // pred_fallthru
      _
    // Predicated region
    $region18: #{autoencoder_forward.1} parent=1 // pred_check
      _
    $region19: #{autoencoder_forward.1} parent=1 // pred_check_branch
      %56 = sbr.rel (0) target = $region21
    $region20: #{autoencoder_forward.1} parent=1 // pred_region
      _
    $region21: #{autoencoder_forward.1} parent=1 // pred_fallthru
      _
    // Predicated region
    $region22: #{autoencoder_forward.1} parent=1 // pred_check
      _
    $region23: #{autoencoder_forward.1} parent=1 // pred_check_branch
      %58 = sbr.rel (0) target = $region25
    $region24: #{autoencoder_forward.1} parent=1 // pred_region
      %60 = dma.done [#allocation3], 128
    $region25: #{autoencoder_forward.1} parent=1 // pred_fallthru
      _
    // Predicated region
    $region26: #{autoencoder_forward.1} parent=1 // pred_check
      _
    $region27: #{autoencoder_forward.1} parent=1 // pred_check_branch
      %62 = sbr.rel (0) target = $region29
    $region28: #{autoencoder_forward.1} parent=1 // pred_region
      %64 = dma.done [#allocation6], 2048
    $region29: #{autoencoder_forward.1} parent=1 // pred_fallthru
      _
    // Predicated region
    $region30: #{autoencoder_forward.1} parent=1 // pred_check
      _
    $region31: #{autoencoder_forward.1} parent=1 // pred_check_branch
      %66 = sbr.rel (0) target = $region33
    $region32: #{autoencoder_forward.1} parent=1 // pred_region
      %68 = dma.done [#allocation6], 2048
    $region33: #{autoencoder_forward.1} parent=1 // pred_fallthru
      _
    %v69 = vld [vmem:[#allocation2] sm:$0xff]
    %v70 = vld [vmem:[#allocation5] sm:$0xff]
    %v71 = vld [vmem:[#allocation5 + $0x8] sm:$0xff]
    %v72 = vld [vmem:[#allocation5 + $0x10] sm:$0xff]
    %v73 = vld [vmem:[#allocation5 + $0x18] sm:$0xff]
    %v74 = vld [vmem:[#allocation5 + $0x20] sm:$0xff]
    %v75 = vld [vmem:[#allocation5 + $0x28] sm:$0xff]
    %v76 = vld [vmem:[#allocation5 + $0x30] sm:$0xff]
    %v77 = vld [vmem:[#allocation5 + $0x38] sm:$0xff]
    %v78 = vld [vmem:[#allocation5 + $0x40] sm:$0xff]
    %v79 = vld [vmem:[#allocation5 + $0x48] sm:$0xff]
    %v80 = vld [vmem:[#allocation5 + $0x50] sm:$0xff]
    %v81 = vld [vmem:[#allocation5 + $0x58] sm:$0xff]
    %v82 = vld [vmem:[#allocation5 + $0x60] sm:$0xff]
    %v83 = vld [vmem:[#allocation5 + $0x68] sm:$0xff]
    %v84 = vld [vmem:[#allocation5 + $0x70] sm:$0xff]
    %v85 = vld [vmem:[#allocation5 + $0x78] sm:$0xff]
    %v86 = vld [vmem:[%s3] sm:$0x1]
    %v88 = vperm.slane %v86, 0
    %90 = vmatpush.msra.mxu0 %v85
    %91 = vmatpush.msra.mxu0 %v84
    %92 = vmatpush.msra.mxu0 %v83
    %93 = vmatpush.msra.mxu0 %v82
    %94 = vmatpush.msra.mxu0 %v81
    %95 = vmatpush.msra.mxu0 %v80
    %96 = vmatpush.msra.mxu0 %v79
    %97 = vmatpush.msra.mxu0 %v78
    %98 = vmatpush.msra.mxu0 %v77
    %99 = vmatpush.msra.mxu0 %v76
    %100 = vmatpush.msra.mxu0 %v75
    %101 = vmatpush.msra.mxu0 %v74
    %102 = vmatpush.msra.mxu0 %v73
    %103 = vmatpush.msra.mxu0 %v72
    %104 = vmatpush.msra.mxu0 %v71
    %105 = vmatpush.msra.mxu0 %v70
    %106 = vmatmul.f32.gmra.mxu0 %v69
    %v107 = vpop.f32.mrf.mxu0
    %v108 = vadd.f32 %v88, %v107
    %109 = vdwg.mxu0
    %v110 = vxor.u32 %v108, 2147483648
    %v111 = vmul.f32 %v110, 1.442695
    %v112 = vpow.pop %v111
    %v113 = vadd.f32 %v112, 1.0
    %v114 = vrcp.pop %v113
    %v115 = vmul.f32 %v113, %v114
    %v116 = vsub.f32 1.0, %v115
    %v117 = vmul.f32 %v114, %v116
    %v118 = vadd.f32 %v114, %v117
    %vm119 = vweird.f32 %v113
    %vm120 = vweird.f32 %v114
    %vm121 = vmor %vm119, %vm120
    %v122 = vsel %vm121, %v114, %v118
    %v123 = vand.u32 2147483647, %v113
    %vm124 = vcmp.eq.f32.partialorder %v123, 8.507059e+37
    %v125 = vand.u32 %v113, 2147483648
    %v126 = vor.u32 1.1754944e-38, %v125
    %v127 = vsel %vm124, %v126, %v122
    %v128 = vmul.f32 1.0, %v127
    %129 = vst [vmem:[#allocation8] sm:$0xff] %v128
    %v130 = vld [vmem:[#allocation7] sm:$0xff]
    %v131 = vld [vmem:[#allocation7 + $0x8] sm:$0xff]
    %v132 = vld [vmem:[#allocation7 + $0x10] sm:$0xff]
    %v133 = vld [vmem:[#allocation7 + $0x18] sm:$0xff]
    %v134 = vld [vmem:[#allocation7 + $0x20] sm:$0xff]
    %v135 = vld [vmem:[#allocation7 + $0x28] sm:$0xff]
    %v136 = vld [vmem:[#allocation7 + $0x30] sm:$0xff]
    %v137 = vld [vmem:[#allocation7 + $0x38] sm:$0xff]
    %v138 = vld [vmem:[#allocation7 + $0x40] sm:$0xff]
    %v139 = vld [vmem:[#allocation7 + $0x48] sm:$0xff]
    %v140 = vld [vmem:[#allocation7 + $0x50] sm:$0xff]
    %v141 = vld [vmem:[#allocation7 + $0x58] sm:$0xff]
    %v142 = vld [vmem:[#allocation7 + $0x60] sm:$0xff]
    %v143 = vld [vmem:[#allocation7 + $0x68] sm:$0xff]
    %v144 = vld [vmem:[#allocation7 + $0x70] sm:$0xff]
    %v145 = vld [vmem:[#allocation7 + $0x78] sm:$0xff]
    %v146 = vld [vmem:[%s4] sm:$0x1]
    %v148 = vperm.slane %v146, 0
    %150 = vmatpush.msra.mxu0 %v145
    %151 = vmatpush.msra.mxu0 %v144
    %152 = vmatpush.msra.mxu0 %v143
    %153 = vmatpush.msra.mxu0 %v142
    %154 = vmatpush.msra.mxu0 %v141
    %155 = vmatpush.msra.mxu0 %v140
    %156 = vmatpush.msra.mxu0 %v139
    %157 = vmatpush.msra.mxu0 %v138
    %158 = vmatpush.msra.mxu0 %v137
    %159 = vmatpush.msra.mxu0 %v136
    %160 = vmatpush.msra.mxu0 %v135
    %161 = vmatpush.msra.mxu0 %v134
    %162 = vmatpush.msra.mxu0 %v133
    %163 = vmatpush.msra.mxu0 %v132
    %164 = vmatpush.msra.mxu0 %v131
    %165 = vmatpush.msra.mxu0 %v130
    %166 = vmatmul.f32.gmra.mxu0 %v128
    %v167 = vpop.f32.mrf.mxu0
    %v168 = vadd.f32 %v148, %v167
    %169 = vdwg.mxu0
    %170 = vst [vmem:[#allocation9] sm:$0xff] %v168
    // Predicated region
    $region34: #{autoencoder_forward.1} parent=1 // pred_check
      _
    $region35: #{autoencoder_forward.1} parent=1 // pred_check_branch
      %172 = sbr.rel (0) target = $region37
    $region36: #{autoencoder_forward.1} parent=1 // pred_region
      %174 = vsyncadd [#allocation4], 0
      %s176 = sshll.u32 [#allocation8], 4
      %s177 = int_to_ptr.vmem [resolvable:$true] %s176
      %s178 = sshll.u32 %s5, 4
      %s179 = int_to_ptr.hbm [resolvable:$true] %s178
      %181 = dma.vmem_to_hbm [thread:$0]  %s177, 128, %s179, [#allocation4]
    $region37: #{autoencoder_forward.1} parent=1 // pred_fallthru
      _
    // Predicated region
    $region38: #{autoencoder_forward.1} parent=1 // pred_check
      _
    $region39: #{autoencoder_forward.1} parent=1 // pred_check_branch
      %183 = sbr.rel (0) target = $region41
    $region40: #{autoencoder_forward.1} parent=1 // pred_region
      %185 = vsyncadd [#allocation10], 0
      %s187 = sshll.u32 [#allocation9], 4
      %s188 = int_to_ptr.vmem [resolvable:$true] %s187
      %s189 = sshll.u32 %s6, 4
      %s190 = int_to_ptr.hbm [resolvable:$true] %s189
      %192 = dma.vmem_to_hbm [thread:$0]  %s188, 128, %s190, [#allocation10]
    $region41: #{autoencoder_forward.1} parent=1 // pred_fallthru
      _
    // Predicated region
    $region42: #{autoencoder_forward.1} parent=1 // pred_check
      _
    $region43: #{autoencoder_forward.1} parent=1 // pred_check_branch
      %194 = sbr.rel (0) target = $region45
    $region44: #{autoencoder_forward.1} parent=1 // pred_region
      %196 = dma.done [#allocation4], 128
    $region45: #{autoencoder_forward.1} parent=1 // pred_fallthru
      _
    // Predicated region
    $region46: #{autoencoder_forward.1} parent=1 // pred_check
      _
    $region47: #{autoencoder_forward.1} parent=1 // pred_check_branch
      %198 = sbr.rel (0) target = $region49
    $region48: #{autoencoder_forward.1} parent=1 // pred_region
      %200 = dma.done [#allocation10], 128
    $region49: #{autoencoder_forward.1} parent=1 // pred_fallthru
      _
    %201 = vsyncpa [#allocation3], 1
    %202 = vsyncpa [#allocation6], 1
    %203 = vsyncpa [#allocation4], 1
    %204 = vsyncpa [#allocation10], 1

</llo_original>
